<compile_context>
chip_gen: v7x
topology: tpu7x:2x2x1
jax: 0.10.0
libtpu: 0.0.40
codegen_flags: <defaults>
</compile_context>

<pallas_src>
import functools

import jax
import jax.numpy as jnp
from jax.experimental import pallas as pl
from jax.experimental.pallas import tpu as pltpu

LANES = 128            # lane width (last dim of every block)
MAX_BLOCK_ROWS = 1024  # 1024 x 128 x f32 = 512 KiB per input block


def _static_pow(b, g):
    """b ** g for a Python-scalar exponent g.

    Non-negative integer exponents use repeated VPU multiplies instead of
    pow's exp+log on the single-slot EUP.
    """
    g = float(g)
    if g.is_integer() and g >= 0:
        gi = int(g)
        if gi == 0:
            return jnp.ones_like(b)
        result = None
        p = b
        while gi:
            if gi & 1:
                result = p if result is None else result * p
            gi >>= 1
            if gi:
                p = p * p
        return result
    return b ** jnp.float32(g)


def _asl_kernel(x_ref, y_ref, o_ref, *, gamma_pos, gamma_neg, clip, eps,
                binary_targets):
    i = pl.program_id(1)  # reduction axis (innermost)

    @pl.when(i == 0)
    def _():
        o_ref[...] = jnp.zeros_like(o_ref)

    x = x_ref[...].astype(jnp.float32)
    t = y_ref[...].astype(jnp.float32)

    apply_w = (gamma_neg > 0) or (gamma_pos > 0)

    if binary_targets:
        # y in {0, 1}: fold the target select into the sigmoid argument
        # (1 - sigmoid(z) == sigmoid(-z)); one log per element.
        pos = t >= 0.5
        s = jax.nn.sigmoid(jnp.where(pos, x, -x))   # xs_pos (pos) / xs_neg (neg)
        if clip > 0:
            p = jnp.where(pos, s, jnp.minimum(s + clip, 1.0))
        else:
            p = s
        loss = jnp.log(jnp.maximum(p, eps))
        if apply_w:
            base = 1.0 - p   # == 1 - xs_pos*y - xs_neg_clipped*(1-y) for binary y
            w = jnp.where(pos,
                          _static_pow(base, gamma_pos),
                          _static_pow(base, gamma_neg))
            loss = loss * w
    else:
        # General (non-binarized) targets: literal formula from the module.
        sp = jax.nn.sigmoid(x)
        sn = 1.0 - sp
        if clip > 0:
            sn = jnp.minimum(sn + clip, 1.0)
        anti = 1.0 - t
        loss = (t * jnp.log(jnp.maximum(sp, eps))
                + anti * jnp.log(jnp.maximum(sn, eps)))
        if apply_w:
            base = 1.0 - sp * t - sn * anti
            expo = gamma_pos * t + gamma_neg * anti
            # pow(b, e) = exp(e * log(b)); the clamp only affects exact zeros,
            # whose result still underflows to 0 (e > 0) or equals 1 (e == 0).
            loss = loss * jnp.exp(expo * jnp.log(jnp.maximum(base, 1e-30)))

    # Fold the block's rows into an (8, 128) vreg-shaped partial sum (pure VPU
    # adds).  The single cross-lane reduction happens once, in the wrapper.
    o_ref[...] += jnp.sum(loss.reshape(-1, 8, LANES), axis=0)


def asymmetric_loss_optimized(x, y, *, gamma_neg=4, gamma_pos=1, clip=0.05,
                              eps=1e-5, binary_targets=True,
                              max_block_rows=MAX_BLOCK_ROWS):
    """Forward pass of AsymmetricLossOptimized.

    x: logits (B, C); y: multi-label binarized targets (B, C).
    Returns  -sum(loss) / B / C * 1000  (scalar, float32).

    binary_targets=True (the module's documented contract) enables the
    single-log / integer-power fast path; set False for arbitrary float targets.
    Targets may be passed in a narrow dtype (bf16 / int) to cut HBM traffic.
    """
    batch = x.shape[0]
    num_classes = y.shape[1]
    n = x.size

    xf = x.reshape(-1)
    yf = y.reshape(-1)

    rows_needed = pl.cdiv(n, LANES)
    if rows_needed <= max_block_rows:
        ncores = 1
        tm = max(8, ((rows_needed + 7) // 8) * 8)
        rows = tm
    else:
        ncores = 2  # v7x: shard row-blocks across both TensorCores.
        tm = max_block_rows
        chunk = ncores * tm
        rows = ((rows_needed + chunk - 1) // chunk) * chunk
    n_pad = rows * LANES

    if n_pad != n:  # skip the extra HBM pass when already block-aligned
        # Neutral padding: target 0 / logit -100 -> sigmoid(+100) == 1.0
        # exactly in f32, so padded elements contribute exactly 0 loss
        # (no in-kernel mask required).
        xf = jnp.pad(xf, (0, n_pad - n), constant_values=-100.0)
        yf = jnp.pad(yf, (0, n_pad - n), constant_values=0)
    xf = xf.reshape(rows, LANES)
    yf = yf.reshape(rows, LANES)

    blocks_per_core = rows // (ncores * tm)

    kernel = functools.partial(
        _asl_kernel,
        gamma_pos=float(gamma_pos),
        gamma_neg=float(gamma_neg),
        clip=float(clip) if clip is not None else 0.0,
        eps=float(eps),
        binary_targets=bool(binary_targets))

    partials = pl.pallas_call(
        kernel,
        out_shape=jax.ShapeDtypeStruct((ncores * 8, LANES), jnp.float32),
        grid_spec=pltpu.PrefetchScalarGridSpec(
            num_scalar_prefetch=0,
            grid=(ncores, blocks_per_core),
            in_specs=[
                pl.BlockSpec((tm, LANES),
                             lambda c, i, bpc=blocks_per_core: (c * bpc + i, 0)),
                pl.BlockSpec((tm, LANES),
                             lambda c, i, bpc=blocks_per_core: (c * bpc + i, 0)),
            ],
            out_specs=pl.BlockSpec((8, LANES), lambda c, i: (c, 0)),
        ),
        compiler_params=pltpu.CompilerParams(
            dimension_semantics=("parallel", "arbitrary")),
    )(xf, yf)

    total = jnp.sum(partials)
    # Match the reference scaling order exactly: (-sum / B) / C * 1000.
    return (-total / batch) / num_classes * 1000.0


def _reference(x, y, gamma_neg=4, gamma_pos=1, clip=0.05, eps=1e-5):
    """Pure-JAX port of AsymmetricLossOptimized.forward (source of truth)."""
    x = x.astype(jnp.float32)
    y = y.astype(jnp.float32)
    anti = 1.0 - y
    xs_pos = jax.nn.sigmoid(x)
    xs_neg = 1.0 - xs_pos
    if clip is not None and clip > 0:
        xs_neg = jnp.minimum(xs_neg + clip, 1.0)
    loss = (y * jnp.log(jnp.maximum(xs_pos, eps))
            + anti * jnp.log(jnp.maximum(xs_neg, eps)))
    if gamma_neg > 0 or gamma_pos > 0:
        w = jnp.power(1.0 - xs_pos * y - xs_neg * anti,
                      gamma_pos * y + gamma_neg * anti)
        loss = loss * w
    out = -jnp.sum(loss) / x.shape[0]
    return out / y.shape[1] * 1000.0


if __name__ == "__main__":
    key = jax.random.PRNGKey(0)
    k1, k2, k3, k4 = jax.random.split(key, 4)

    # Multi-label classification: logits / binarized targets (batch, num_classes).
    x_small = jax.random.normal(k1, (2, 80), dtype=jnp.float32)
    y_small = (jax.random.uniform(k2, (2, 80)) > 0.5).astype(jnp.float32)

    out = jax.block_until_ready(asymmetric_loss_optimized(x_small, y_small))
    ref = _reference(x_small, y_small)
    assert jnp.allclose(out, ref, rtol=2e-5, atol=1e-3), (out, ref)

    # Targets carry no precision: bf16 targets halve their HBM traffic.
    out_bf16 = jax.block_until_ready(
        asymmetric_loss_optimized(x_small, y_small.astype(jnp.bfloat16)))
    assert jnp.allclose(out_bf16, ref, rtol=2e-5, atol=1e-3), (out_bf16, ref)

    # General (non-binary-assuming) path on the same inputs.
    out_gen = jax.block_until_ready(
        asymmetric_loss_optimized(x_small, y_small, binary_targets=False))
    assert jnp.allclose(out_gen, ref, rtol=2e-5, atol=1e-3), (out_gen, ref)

    # Exercise the multi-block + 2-way-parallel grid path with a still-small
    # input by shrinking the block-rows tuning knob.
    x_big = jax.random.normal(k3, (8, 300), dtype=jnp.float32)
    y_big = (jax.random.uniform(k4, (8, 300)) > 0.5).astype(jnp.float32)
    out_big = jax.block_until_ready(
        asymmetric_loss_optimized(x_big, y_big, max_block_rows=8))
    ref_big = _reference(x_big, y_big)
    assert jnp.allclose(out_big, ref_big, rtol=2e-5, atol=1e-3), (out_big, ref_big)

    print("KERNEL_OK")
</pallas_src>

<mosaic_0001>
module attributes {stable_mosaic.version = 11 : i64} {
  func.func @_asl_kernel(%arg0: i32, %arg1: i32, %arg2: memref<8x128xf32, #tpu.memory_space<vmem>>, %arg3: memref<8x128xf32, #tpu.memory_space<vmem>>, %arg4: memref<8x128xf32, #tpu.memory_space<vmem>>) attributes {dimension_semantics = [#tpu.dimension_semantics<parallel>, #tpu.dimension_semantics<arbitrary>], iteration_bounds = array<i64: 1, 1>, scalar_prefetch = 0 : i64, scratch_operands = 0 : i64, tpu.core_type = #tpu.core_type<tc>, window_params = [{transform_indices = @transform_0, window_bounds = array<i64: 8, 128>}, {transform_indices = @transform_1, window_bounds = array<i64: 8, 128>}, {transform_indices = @transform_2, window_bounds = array<i64: 8, 128>}]} {
    %c0_i32 = arith.constant 0 : i32
    %0 = arith.cmpi eq, %arg1, %c0_i32 : i32
    %1 = arith.extui %0 : i1 to i32
    %c0_i32_0 = arith.constant 0 : i32
    %2 = arith.cmpi ne, %1, %c0_i32_0 : i32
    scf.if %2 {
      %cst_15 = arith.constant 0.000000e+00 : f32
      %34 = vector.broadcast %cst_15 : f32 to vector<8x128xf32>
      %c0_16 = arith.constant 0 : index
      %c0_17 = arith.constant 0 : index
      %35 = vector.load %arg4[%c0_16, %c0_17] : memref<8x128xf32, #tpu.memory_space<vmem>>, vector<8x128xf32>
      tpu.vector_store %arg4[%c0_16, %c0_17], %34 {strides = array<i32>} : memref<8x128xf32, #tpu.memory_space<vmem>>, vector<8x128xf32>,
    } else {
    }
    %c0 = arith.constant 0 : index
    %c0_1 = arith.constant 0 : index
    %3 = vector.load %arg2[%c0, %c0_1] : memref<8x128xf32, #tpu.memory_space<vmem>>, vector<8x128xf32>
    %c0_2 = arith.constant 0 : index
    %c0_3 = arith.constant 0 : index
    %4 = vector.load %arg3[%c0_2, %c0_3] : memref<8x128xf32, #tpu.memory_space<vmem>>, vector<8x128xf32>
    %cst = arith.constant 5.000000e-01 : f32
    %5 = vector.broadcast %cst : f32 to vector<8x128xf32>
    %6 = arith.cmpf oge, %4, %5 : vector<8x128xf32>
    %cst_4 = arith.constant 0.000000e+00 : f32
    %7 = vector.broadcast %cst_4 : f32 to vector<8x128xf32>
    %8 = arith.subf %7, %3 : vector<8x128xf32>
    %9 = arith.select %6, %3, %8 : vector<8x128xi1>, vector<8x128xf32>
    %10 = arith.negf %9 : vector<8x128xf32>
    %11 = math.exp %10 : vector<8x128xf32>
    %cst_5 = arith.constant 1.000000e+00 : f32
    %12 = vector.broadcast %cst_5 : f32 to vector<8x128xf32>
    %13 = arith.addf %12, %11 : vector<8x128xf32>
    %14 = arith.divf %12, %13 : vector<8x128xf32>
    %cst_6 = arith.constant 5.000000e-02 : f32
    %15 = vector.broadcast %cst_6 : f32 to vector<8x128xf32>
    %16 = arith.addf %14, %15 : vector<8x128xf32>
    %cst_7 = arith.constant 1.000000e+00 : f32
    %17 = vector.broadcast %cst_7 : f32 to vector<8x128xf32>
    %18 = arith.minimumf %16, %17 : vector<8x128xf32>
    %19 = arith.select %6, %14, %18 : vector<8x128xi1>, vector<8x128xf32>
    %cst_8 = arith.constant 9.99999974E-6 : f32
    %20 = vector.broadcast %cst_8 : f32 to vector<8x128xf32>
    %21 = arith.maximumf %19, %20 : vector<8x128xf32>
    %22 = math.log %21 : vector<8x128xf32>
    %cst_9 = arith.constant 1.000000e+00 : f32
    %23 = vector.broadcast %cst_9 : f32 to vector<8x128xf32>
    %24 = arith.subf %23, %19 : vector<8x128xf32>
    %25 = arith.mulf %24, %24 : vector<8x128xf32>
    %26 = arith.mulf %25, %25 : vector<8x128xf32>
    %27 = arith.select %6, %24, %26 : vector<8x128xi1>, vector<8x128xf32>
    %28 = arith.mulf %22, %27 : vector<8x128xf32>
    %c0_10 = arith.constant 0 : index
    %c0_11 = arith.constant 0 : index
    %29 = vector.load %arg4[%c0_10, %c0_11] : memref<8x128xf32, #tpu.memory_space<vmem>>, vector<8x128xf32>
    %30 = vector.shape_cast %28 : vector<8x128xf32> to vector<1x8x128xf32>
    %cst_12 = arith.constant dense<0.000000e+00> : vector<8x128xf32>
    %31 = vector.multi_reduction <add>, %30, %cst_12 [0] : vector<1x8x128xf32> to vector<8x128xf32>
    %32 = arith.addf %29, %31 : vector<8x128xf32>
    %c0_13 = arith.constant 0 : index
    %c0_14 = arith.constant 0 : index
    %33 = vector.load %arg4[%c0_13, %c0_14] : memref<8x128xf32, #tpu.memory_space<vmem>>, vector<8x128xf32>
    tpu.vector_store %arg4[%c0_13, %c0_14], %32 {strides = array<i32>} : memref<8x128xf32, #tpu.memory_space<vmem>>, vector<8x128xf32>,
    return
  }
  func.func @transform_0(%arg0: i32, %arg1: i32) -> (i32, i32) {
    %c1_i32 = arith.constant 1 : i32
    %0 = arith.muli %arg0, %c1_i32 : i32
    %1 = arith.addi %0, %arg1 : i32
    %c0_i32 = arith.constant 0 : i32
    %c0_i32_0 = arith.constant 0 : i32
    return %1, %c0_i32 : i32, i32
  }
  func.func @transform_1(%arg0: i32, %arg1: i32) -> (i32, i32) {
    %c1_i32 = arith.constant 1 : i32
    %0 = arith.muli %arg0, %c1_i32 : i32
    %1 = arith.addi %0, %arg1 : i32
    %c0_i32 = arith.constant 0 : i32
    %c0_i32_0 = arith.constant 0 : i32
    return %1, %c0_i32 : i32, i32
  }
  func.func @transform_2(%arg0: i32, %arg1: i32) -> (i32, i32) {
    %c0_i32 = arith.constant 0 : i32
    %c0_i32_0 = arith.constant 0 : i32
    return %arg0, %c0_i32 : i32, i32
  }
}

</mosaic_0001>

<llo_original>
// kernel: tpu_custom_call.1
$region0: #{tpu_custom_call.1}
  #allocation0 [shape = 'u32[]', space=smem, size = 0x4, offset = 0x4, fixed_abs, tag = 'smem constant byte address 0x4 - core index']
  #allocation1 [shape = 'u32[144,128]{1,0:T(1,128)}', space=vmem, size = 0x12000, scoped, tag = 'internal scratch']
  %s0 = inlined_call_operand.hbm [shape: f32[8,128], index: 0, kind: input, shape index: {}]
  %s1 = inlined_call_operand.hbm [shape: f32[8,128], index: 1, kind: input, shape index: {}]
  %s2 = inlined_call_operand.hbm [shape: f32[8,128], index: 2, kind: output, shape index: {}]
  %s3 = sld [smem:[#allocation0]]
  $region30: #{tpu_custom_call.1} parent=0
    _
  %s5 = ssub.s32 1, %s3
  %s6 = scalar_select 0, %s5, %s3
  $region1: #{tpu_custom_call.1} parent=0
    #allocation2 [shape = 'u8[4096]{0}', space=vmem, size = 0x1000, scoped, tag = 'input window, operand 0, single buffered']
    #allocation3 [shape = 's32[1]{0}', space=sflag, size = 0x4, scoped, tag = 'scoped memory for tpu_custom_call.1']
    #allocation4 [shape = 's32[1]{0}', space=sflag, size = 0x4, scoped, tag = 'scoped memory for tpu_custom_call.1']
    #allocation5 [shape = 'u8[4096]{0}', space=vmem, size = 0x1000, scoped, tag = 'input window, operand 1, single buffered']
    #allocation6 [shape = 's32[1]{0}', space=sflag, size = 0x4, scoped, tag = 'scoped memory for tpu_custom_call.1']
    #allocation7 [shape = 'u8[4096]{0}', space=vmem, size = 0x1000, scoped, tag = 'output window, operand 0, single buffered']
    %7 = vsyncpa [#allocation3], 0
    %8 = vsyncpa [#allocation6], 0
    %9 = vsyncpa [#allocation4], 0
    // Predicated region
    $region2: #{tpu_custom_call.1} parent=1 // pred_check
      _
    $region3: #{tpu_custom_call.1} parent=1 // pred_check_branch
      %11 = sbr.rel (0) target = $region5
    $region4: #{tpu_custom_call.1} parent=1 // pred_region
      %s12 = sadd.s32 0, 0
      %s14 = ssub.s32 128, 128
      %15 = vsyncadd [#allocation3], %s14
      %s16 = smul.addr %s12, 128
      %s17 = scalar_lea.hbm %s0, %s16
      %s19 = sshll.u32 [#allocation2], 4
      %s20 = int_to_ptr.vmem [resolvable:$true] %s19
      %22 = dma.hbm_to_vmem [thread:$0]  %s17, 128, %s20, [#allocation3]
    $region5: #{tpu_custom_call.1} parent=1 // pred_fallthru
      _
    // Predicated region
    $region6: #{tpu_custom_call.1} parent=1 // pred_check
      _
    $region7: #{tpu_custom_call.1} parent=1 // pred_check_branch
      %24 = sbr.rel (0) target = $region9
    $region8: #{tpu_custom_call.1} parent=1 // pred_region
      %s25 = sadd.s32 0, 0
      %s27 = ssub.s32 128, 128
      %28 = vsyncadd [#allocation6], %s27
      %s29 = smul.addr %s25, 128
      %s30 = scalar_lea.hbm %s1, %s29
      %s32 = sshll.u32 [#allocation5], 4
      %s33 = int_to_ptr.vmem [resolvable:$true] %s32
      %35 = dma.hbm_to_vmem [thread:$0]  %s30, 128, %s33, [#allocation6]
    $region9: #{tpu_custom_call.1} parent=1 // pred_fallthru
      _
    // Predicated region
    $region10: #{tpu_custom_call.1} parent=1 // pred_check
      _
    $region11: #{tpu_custom_call.1} parent=1 // pred_check_branch
      %37 = sbr.rel (0) target = $region13
    $region12: #{tpu_custom_call.1} parent=1 // pred_region
      %38 = dma.done [#allocation3], 128
    $region13: #{tpu_custom_call.1} parent=1 // pred_fallthru
      _
    // Predicated region
    $region14: #{tpu_custom_call.1} parent=1 // pred_check
      _
    $region15: #{tpu_custom_call.1} parent=1 // pred_check_branch
      %40 = sbr.rel (0) target = $region17
    $region16: #{tpu_custom_call.1} parent=1 // pred_region
      %41 = dma.done [#allocation6], 128
    $region17: #{tpu_custom_call.1} parent=1 // pred_fallthru
      _
    %s42 = sadd.s32 0, 0
    %s43 = sadd.s32 0, 0
    %p44 = scmp.eq.s32.totalorder 0, 0
    // Predicated region
    $region18: #{tpu_custom_call.1} parent=1 // pred_check
      %p45 = pneg %p44
    $region19: #{tpu_custom_call.1} parent=1 // pred_check_branch
      %47 = sbr.rel (%p45) target = $region21
    $region20: #{tpu_custom_call.1} parent=1 // pred_region
      %48 = vst [vmem:[#allocation7] sm:$0xff] 0.0
    $region21: #{tpu_custom_call.1} parent=1 // pred_fallthru
      _
    %v49 = vld [vmem:[#allocation2] sm:$0xff]
    %v50 = vld [vmem:[#allocation5] sm:$0xff]
    %vm51 = vcmp.ge.f32.partialorder %v50, 0.5
    %v52 = vsub.f32 0.0, %v49
    %v53 = vsel %vm51, %v49, %v52
    %v54 = vxor.u32 %v53, 2147483648
    %v55 = vmul.f32 %v54, 1.442695
    %v56 = vpow.pop %v55
    %v57 = vadd.f32 %v56, 1.0
    %v58 = vrcp.pop %v57
    %v59 = vmul.f32 1.0, %v58
    %v60 = vadd.f32 %v59, 0.05
    %v61 = vmin.f32 %v60, 1.0
    %v62 = vsel %vm51, %v59, %v61
    %v63 = vmax.f32 %v62, 1e-05
    %v64 = vlog2.pop %v63
    %v65 = vmul.f32 %v64, 0.6931472
    %v66 = vsub.f32 1.0, %v62
    %v67 = vmul.f32 %v66, %v66
    %v68 = vmul.f32 %v67, %v67
    %v69 = vsel %vm51, %v66, %v68
    %v70 = vmul.f32 %v65, %v69
    %v71 = vld [vmem:[#allocation7] sm:$0xff]
    %v72 = vadd.f32 %v70, 0.0
    %v73 = vadd.f32 %v71, %v72
    %74 = vst [vmem:[#allocation7] sm:$0xff] %v73
    // Predicated region
    $region22: #{tpu_custom_call.1} parent=1 // pred_check
      _
    $region23: #{tpu_custom_call.1} parent=1 // pred_check_branch
      %76 = sbr.rel (0) target = $region25
    $region24: #{tpu_custom_call.1} parent=1 // pred_region
      %s78 = ssub.s32 128, 128
      %79 = vsyncadd [#allocation4], %s78
      %s81 = sshll.u32 [#allocation7], 4
      %s82 = int_to_ptr.vmem [resolvable:$true] %s81
      %84 = dma.vmem_to_hbm [thread:$0]  %s82, 128, %s2, [#allocation4]
    $region25: #{tpu_custom_call.1} parent=1 // pred_fallthru
      _
    // Predicated region
    $region26: #{tpu_custom_call.1} parent=1 // pred_check
      _
    $region27: #{tpu_custom_call.1} parent=1 // pred_check_branch
      %86 = sbr.rel (0) target = $region29
    $region28: #{tpu_custom_call.1} parent=1 // pred_region
      %87 = dma.done [#allocation4], 128
    $region29: #{tpu_custom_call.1} parent=1 // pred_fallthru
      _
    %88 = vsyncpa [#allocation3], 1
    %89 = vsyncpa [#allocation6], 1
    %90 = vsyncpa [#allocation4], 1

</llo_original>
